<compile_context>
chip_gen: v7x
topology: tpu7x:2x2x1
jax: 0.10.0
libtpu: 0.0.40
codegen_flags: <defaults>
</compile_context>

<pallas_src>
import math

import jax
import jax.numpy as jnp
from jax.experimental import pallas as pl
from jax.experimental.pallas import tpu as pltpu


def _round_up(x: int, m: int) -> int:
    return ((x + m - 1) // m) * m


def _conv_matmul_kernel(w_ref, b_ref, x_ref, o_ref):
    """One lane-dense matmul tile of the im2col'd 3x3 SAME conv.

    w_ref : (C_out, K)   bf16, K = 9*C_in   (constant block -> VMEM-resident)
    b_ref : (C_out, 1)   f32                 (constant block -> VMEM-resident)
    x_ref : (TN, K)      bf16 im2col slab tile
    o_ref : (C_out, TN)  output tile; lane dim TN is a multiple of 128
    """
    acc = jax.lax.dot_general(
        w_ref[...],
        x_ref[...],
        dimension_numbers=(((1,), (1,)), ((), ())),  # (C_out,K) @ (TN,K)^T -> (C_out,TN)
        preferred_element_type=jnp.float32,
    )
    o_ref[...] = (acc + b_ref[...]).astype(o_ref.dtype)


def output_proj_pallas(x, weight, bias, H=None, W=None):
    """x: (B, L, C_in); weight: (3, 3, C_in, C_out) HWIO; bias: (C_out,).

    Returns (B, C_out, H, W), matching the PyTorch module output.
    """
    B, L, C_in = x.shape
    if H is None:
        H = int(math.sqrt(L))
        W = H
    assert H * W == L, "L must equal H*W (square by default, or pass H, W)"
    C_out = weight.shape[-1]
    K = 9 * C_in
    N = B * H * W

    # ---- wrapper: im2col slab (single K = 9*C_in contraction) ----------------
    # x.transpose(1,2).view(B,C,H,W) in NCHW == x.reshape(B,H,W,C) in NHWC.
    x_nhwc = x.reshape(B, H, W, C_in)
    xp = jnp.pad(x_nhwc, ((0, 0), (1, 1), (1, 1), (0, 0)))         # SAME padding
    taps = [xp[:, dy:dy + H, dx:dx + W, :] for dy in range(3) for dx in range(3)]
    # Concat order (ky-major, kx, then ci) matches weight.reshape(9*C_in, C_out).
    slab = jnp.concatenate(taps, axis=-1).reshape(N, K).astype(jnp.bfloat16)

    w2 = jnp.transpose(weight.reshape(K, C_out)).astype(jnp.bfloat16)   # (C_out, K)
    b2 = bias.reshape(C_out, 1).astype(jnp.float32)                     # (C_out, 1)

    # ---- tile the flattened-batch N axis --------------------------------------
    TN_MAX = 2048                        # lanes per grid step
    VMEM_SLAB_BUDGET = 8 << 20           # per slab buffer (Pallas double-buffers it)

    n_rounded = _round_up(N, 128)
    max_tn_vmem = max(128, (VMEM_SLAB_BUDGET // (K * 2)) // 128 * 128)
    tn_target = max(128, min(n_rounded, TN_MAX, max_tn_vmem))
    steps = -(-n_rounded // tn_target)
    if steps == 1 and n_rounded >= 2048:
        steps = 2                        # give v7x's second TensorCore a block
    TN = _round_up(-(-n_rounded // steps), 128)
    N_pad = TN * steps
    if N_pad > N:
        slab = jnp.pad(slab, ((0, N_pad - N), (0, 0)))

    out_itemsize = jnp.dtype(x.dtype).itemsize
    need = (2 * TN * K * 2                       # double-buffered slab tiles (bf16)
            + 2 * C_out * TN * out_itemsize      # double-buffered output tiles
            + C_out * K * 2 + C_out * 4          # resident weight + bias
            + (1 << 20))                         # margin
    vmem_limit = int(min(max(2 * need, 32 << 20), 48 << 20))

    out_flat = pl.pallas_call(
        _conv_matmul_kernel,
        out_shape=jax.ShapeDtypeStruct((C_out, N_pad), x.dtype),
        grid_spec=pltpu.PrefetchScalarGridSpec(
            num_scalar_prefetch=0,
            grid=(steps,),
            in_specs=[
                pl.BlockSpec((C_out, K), lambda i: (0, 0)),  # weight (resident, DMA'd once)
                pl.BlockSpec((C_out, 1), lambda i: (0, 0)),  # bias   (resident, DMA'd once)
                pl.BlockSpec((TN, K), lambda i: (i, 0)),     # im2col slab tile
            ],
            out_specs=pl.BlockSpec((C_out, TN), lambda i: (0, i)),
        ),
        compiler_params=pltpu.CompilerParams(
            dimension_semantics=("parallel",),
            vmem_limit_bytes=vmem_limit,
        ),
    )(w2, b2, slab)

    # (C_out, N) -> (B, C_out, H, W).  Output is tiny (C_out channels), so this
    # final transpose is negligible HBM traffic.
    out = out_flat[:, :N].reshape(C_out, B, H, W)
    return jnp.transpose(out, (1, 0, 2, 3))


if __name__ == "__main__":
    # Small shapes consistent with the module: B=2, in_channel=32, out_channel=3, H=W=16.
    B, C_in, C_out, H, W = 2, 32, 3, 16, 16
    L = H * W

    k1, k2, k3 = jax.random.split(jax.random.PRNGKey(0), 3)
    weight = jax.random.normal(k1, (3, 3, C_in, C_out), jnp.float32) * (
        1.0 / math.sqrt(9 * C_in)
    )
    bias = jax.random.normal(k2, (C_out,), jnp.float32) * 0.1
    x = jax.random.normal(k3, (B, L, C_in), jnp.float32)

    out = jax.block_until_ready(output_proj_pallas(x, weight, bias))
    assert out.shape == (B, C_out, H, W), out.shape

    # Reference: XLA conv (same math as nn.Conv2d with padding=1, stride=1), full precision.
    x_nhwc = x.reshape(B, H, W, C_in)
    ref = jax.lax.conv_general_dilated(
        x_nhwc,
        weight,
        window_strides=(1, 1),
        padding="SAME",
        dimension_numbers=("NHWC", "HWIO", "NHWC"),
        precision=jax.lax.Precision.HIGHEST,
    ) + bias
    ref_nchw = jnp.transpose(ref, (0, 3, 1, 2))
    # bf16 operands with f32 accumulation -> ~1e-3-level absolute error vs f32 ref.
    assert jnp.allclose(out, ref_nchw, rtol=2e-2, atol=2e-2), float(
        jnp.max(jnp.abs(out - ref_nchw))
    )

    print("KERNEL_OK")
</pallas_src>

<mosaic_0001>
module attributes {stable_mosaic.version = 11 : i64} {
  func.func @_conv_matmul_kernel(%arg0: i32, %arg1: memref<3x288xbf16, #tpu.memory_space<vmem>>, %arg2: memref<3x1xf32, #tpu.memory_space<vmem>>, %arg3: memref<512x288xbf16, #tpu.memory_space<vmem>>, %arg4: memref<3x512xf32, #tpu.memory_space<vmem>>) attributes {dimension_semantics = [#tpu.dimension_semantics<parallel>], iteration_bounds = array<i64: 1>, scalar_prefetch = 0 : i64, scratch_operands = 0 : i64, tpu.core_type = #tpu.core_type<tc>, window_params = [{pipeline_mode = #tpu.pipeline_mode<synchronous>, transform_indices = @transform_0, window_bounds = array<i64: 3, 288>}, {pipeline_mode = #tpu.pipeline_mode<synchronous>, transform_indices = @transform_1, window_bounds = array<i64: 3, 1>}, {transform_indices = @transform_2, window_bounds = array<i64: 512, 288>}, {transform_indices = @transform_3, window_bounds = array<i64: 3, 512>}]} {
    %c0 = arith.constant 0 : index
    %c0_0 = arith.constant 0 : index
    %0 = vector.load %arg1[%c0, %c0_0] : memref<3x288xbf16, #tpu.memory_space<vmem>>, vector<3x288xbf16>
    %c0_1 = arith.constant 0 : index
    %c0_2 = arith.constant 0 : index
    %1 = vector.load %arg3[%c0_1, %c0_2] : memref<512x288xbf16, #tpu.memory_space<vmem>>, vector<512x288xbf16>
    %cst = arith.constant dense<0.000000e+00> : vector<3x512xf32>
    %2 = tpu.matmul %0, %1, %cst {dimension_numbers = #tpu.dot_dimension_numbers<[1], [1], [0], [0], [0, 0, 1, 0], [], []>} : vector<3x288xbf16>, vector<512x288xbf16>, vector<3x512xf32> -> vector<3x512xf32>
    %c0_3 = arith.constant 0 : index
    %c0_4 = arith.constant 0 : index
    %3 = vector.load %arg2[%c0_3, %c0_4] : memref<3x1xf32, #tpu.memory_space<vmem>>, vector<3x1xf32>
    %4 = vector.broadcast %3 : vector<3x1xf32> to vector<3x512xf32>
    %5 = arith.addf %2, %4 : vector<3x512xf32>
    %c0_5 = arith.constant 0 : index
    %c0_6 = arith.constant 0 : index
    %6 = vector.load %arg4[%c0_5, %c0_6] : memref<3x512xf32, #tpu.memory_space<vmem>>, vector<3x512xf32>
    tpu.vector_store %arg4[%c0_5, %c0_6], %5 {strides = array<i32>} : memref<3x512xf32, #tpu.memory_space<vmem>>, vector<3x512xf32>,
    return
  }
  func.func @transform_0(%arg0: i32) -> (i32, i32) {
    %c0_i32 = arith.constant 0 : i32
    %c0_i32_0 = arith.constant 0 : i32
    %c0_i32_1 = arith.constant 0 : i32
    return %c0_i32, %c0_i32_0 : i32, i32
  }
  func.func @transform_1(%arg0: i32) -> (i32, i32) {
    %c0_i32 = arith.constant 0 : i32
    %c0_i32_0 = arith.constant 0 : i32
    %c0_i32_1 = arith.constant 0 : i32
    return %c0_i32, %c0_i32_0 : i32, i32
  }
  func.func @transform_2(%arg0: i32) -> (i32, i32) {
    %c0_i32 = arith.constant 0 : i32
    %c0_i32_0 = arith.constant 0 : i32
    return %arg0, %c0_i32 : i32, i32
  }
  func.func @transform_3(%arg0: i32) -> (i32, i32) {
    %c0_i32 = arith.constant 0 : i32
    %c0_i32_0 = arith.constant 0 : i32
    return %c0_i32, %arg0 : i32, i32
  }
}

</mosaic_0001>

<llo_original>
// kernel: tpu_custom_call.1
$region0: #{tpu_custom_call.1}
  #allocation0 [shape = 'u32[]', space=smem, size = 0x4, offset = 0x4, fixed_abs, tag = 'smem constant byte address 0x4 - core index']
  #allocation1 [shape = 'u32[144,128]{1,0:T(1,128)}', space=vmem, size = 0x12000, scoped, tag = 'internal scratch']
  %s0 = inlined_call_operand.vmem [shape: bf16[3,288], index: 0, kind: input, shape index: {}]
  %s1 = inlined_call_operand.vmem [shape: f32[3,1], index: 1, kind: input, shape index: {}]
  %s2 = inlined_call_operand.vmem [shape: bf16[512,288], index: 2, kind: input, shape index: {}]
  %s3 = inlined_call_operand.hbm [shape: f32[3,512], index: 3, kind: output, shape index: {}]
  %s4 = sld [smem:[#allocation0]]
  $region22: #{tpu_custom_call.1} parent=0
    _
  %s6 = ssub.s32 1, %s4
  %s7 = scalar_select 0, %s6, %s4
  $region1: #{tpu_custom_call.1} parent=0
    #allocation2 [shape = 'u8[8192]{0}', space=vmem, size = 0x2000, scoped, tag = 'output window, operand 0, single buffered']
    #allocation3 [shape = 's32[1]{0}', space=sflag, size = 0x4, scoped, tag = 'scoped memory for tpu_custom_call.1']
    %8 = vsyncpa [#allocation3], 0
    // Predicated region
    $region2: #{tpu_custom_call.1} parent=1 // pred_check
      _
    $region3: #{tpu_custom_call.1} parent=1 // pred_check_branch
      %10 = sbr.rel (0) target = $region5
    $region4: #{tpu_custom_call.1} parent=1 // pred_region
      _
    $region5: #{tpu_custom_call.1} parent=1 // pred_fallthru
      _
    // Predicated region
    $region6: #{tpu_custom_call.1} parent=1 // pred_check
      _
    $region7: #{tpu_custom_call.1} parent=1 // pred_check_branch
      %12 = sbr.rel (0) target = $region9
    $region8: #{tpu_custom_call.1} parent=1 // pred_region
      _
    $region9: #{tpu_custom_call.1} parent=1 // pred_fallthru
      _
    // Predicated region
    $region10: #{tpu_custom_call.1} parent=1 // pred_check
      _
    $region11: #{tpu_custom_call.1} parent=1 // pred_check_branch
      %14 = sbr.rel (0) target = $region13
    $region12: #{tpu_custom_call.1} parent=1 // pred_region
      _
    $region13: #{tpu_custom_call.1} parent=1 // pred_fallthru
      _
    %v16 = vld [vmem:[%s0] sm:$0x3f]
    %v17 = vld [vmem:[%s2] sm:$0xff]
    %v18 = vld [vmem:[%s2 + $0x8] sm:$0xf]
    %v19 = vld [vmem:[%s2 + $0xc] sm:$0xff]
    %v20 = vld [vmem:[%s2 + $0x14] sm:$0xf]
    %v21 = vld [vmem:[%s2 + $0x18] sm:$0xff]
    %v22 = vld [vmem:[%s2 + $0x20] sm:$0xf]
    %v23 = vld [vmem:[%s2 + $0x24] sm:$0xff]
    %v24 = vld [vmem:[%s2 + $0x2c] sm:$0xf]
    %v25 = vld [vmem:[%s2 + $0x30] sm:$0xff]
    %v26 = vld [vmem:[%s2 + $0x38] sm:$0xf]
    %v27 = vld [vmem:[%s2 + $0x3c] sm:$0xff]
    %v28 = vld [vmem:[%s2 + $0x44] sm:$0xf]
    %v29 = vld [vmem:[%s2 + $0x48] sm:$0xff]
    %v30 = vld [vmem:[%s2 + $0x50] sm:$0xf]
    %v31 = vld [vmem:[%s2 + $0x54] sm:$0xff]
    %v32 = vld [vmem:[%s2 + $0x5c] sm:$0xf]
    %v33 = vld [vmem:[%s2 + $0x60] sm:$0xff]
    %v34 = vld [vmem:[%s2 + $0x68] sm:$0xf]
    %v35 = vld [vmem:[%s2 + $0x6c] sm:$0xff]
    %v36 = vld [vmem:[%s2 + $0x74] sm:$0xf]
    %v37 = vld [vmem:[%s2 + $0x78] sm:$0xff]
    %v38 = vld [vmem:[%s2 + $0x80] sm:$0xf]
    %v39 = vld [vmem:[%s2 + $0x84] sm:$0xff]
    %v40 = vld [vmem:[%s2 + $0x8c] sm:$0xf]
    %v41 = vld [vmem:[%s2 + $0x90] sm:$0xff]
    %v42 = vld [vmem:[%s2 + $0x98] sm:$0xf]
    %v43 = vld [vmem:[%s2 + $0x9c] sm:$0xff]
    %v44 = vld [vmem:[%s2 + $0xa4] sm:$0xf]
    %v45 = vld [vmem:[%s2 + $0xa8] sm:$0xff]
    %v46 = vld [vmem:[%s2 + $0xb0] sm:$0xf]
    %v47 = vld [vmem:[%s2 + $0xb4] sm:$0xff]
    %v48 = vld [vmem:[%s2 + $0xbc] sm:$0xf]
    %v49 = vld [vmem:[%s2 + $0xc0] sm:$0xff]
    %v50 = vld [vmem:[%s2 + $0xc8] sm:$0xf]
    %v51 = vld [vmem:[%s2 + $0xcc] sm:$0xff]
    %v52 = vld [vmem:[%s2 + $0xd4] sm:$0xf]
    %v53 = vld [vmem:[%s2 + $0xd8] sm:$0xff]
    %v54 = vld [vmem:[%s2 + $0xe0] sm:$0xf]
    %v55 = vld [vmem:[%s2 + $0xe4] sm:$0xff]
    %v56 = vld [vmem:[%s2 + $0xec] sm:$0xf]
    %v57 = vld [vmem:[%s2 + $0xf0] sm:$0xff]
    %v58 = vld [vmem:[%s2 + $0xf8] sm:$0xf]
    %v59 = vld [vmem:[%s2 + $0xfc] sm:$0xff]
    %v60 = vld [vmem:[%s2 + $0x104] sm:$0xf]
    %v61 = vld [vmem:[%s2 + $0x108] sm:$0xff]
    %v62 = vld [vmem:[%s2 + $0x110] sm:$0xf]
    %v63 = vld [vmem:[%s2 + $0x114] sm:$0xff]
    %v64 = vld [vmem:[%s2 + $0x11c] sm:$0xf]
    %v65 = vld [vmem:[%s2 + $0x120] sm:$0xff]
    %v66 = vld [vmem:[%s2 + $0x128] sm:$0xf]
    %v67 = vld [vmem:[%s2 + $0x12c] sm:$0xff]
    %v68 = vld [vmem:[%s2 + $0x134] sm:$0xf]
    %v69 = vld [vmem:[%s2 + $0x138] sm:$0xff]
    %v70 = vld [vmem:[%s2 + $0x140] sm:$0xf]
    %v71 = vld [vmem:[%s2 + $0x144] sm:$0xff]
    %v72 = vld [vmem:[%s2 + $0x14c] sm:$0xf]
    %v73 = vld [vmem:[%s2 + $0x150] sm:$0xff]
    %v74 = vld [vmem:[%s2 + $0x158] sm:$0xf]
    %v75 = vld [vmem:[%s2 + $0x15c] sm:$0xff]
    %v76 = vld [vmem:[%s2 + $0x164] sm:$0xf]
    %v77 = vld [vmem:[%s2 + $0x168] sm:$0xff]
    %v78 = vld [vmem:[%s2 + $0x170] sm:$0xf]
    %v79 = vld [vmem:[%s2 + $0x174] sm:$0xff]
    %v80 = vld [vmem:[%s2 + $0x17c] sm:$0xf]
    %v81 = vld [vmem:[%s2 + $0x180] sm:$0xff]
    %v82 = vld [vmem:[%s2 + $0x188] sm:$0xf]
    %v83 = vld [vmem:[%s2 + $0x18c] sm:$0xff]
    %v84 = vld [vmem:[%s2 + $0x194] sm:$0xf]
    %v85 = vld [vmem:[%s2 + $0x198] sm:$0xff]
    %v86 = vld [vmem:[%s2 + $0x1a0] sm:$0xf]
    %v87 = vld [vmem:[%s2 + $0x1a4] sm:$0xff]
    %v88 = vld [vmem:[%s2 + $0x1ac] sm:$0xf]
    %v89 = vld [vmem:[%s2 + $0x1b0] sm:$0xff]
    %v90 = vld [vmem:[%s2 + $0x1b8] sm:$0xf]
    %v91 = vld [vmem:[%s2 + $0x1bc] sm:$0xff]
    %v92 = vld [vmem:[%s2 + $0x1c4] sm:$0xf]
    %v93 = vld [vmem:[%s2 + $0x1c8] sm:$0xff]
    %v94 = vld [vmem:[%s2 + $0x1d0] sm:$0xf]
    %v95 = vld [vmem:[%s2 + $0x1d4] sm:$0xff]
    %v96 = vld [vmem:[%s2 + $0x1dc] sm:$0xf]
    %v97 = vld [vmem:[%s2 + $0x1e0] sm:$0xff]
    %v98 = vld [vmem:[%s2 + $0x1e8] sm:$0xf]
    %v99 = vld [vmem:[%s2 + $0x1ec] sm:$0xff]
    %v100 = vld [vmem:[%s2 + $0x1f4] sm:$0xf]
    %v101 = vld [vmem:[%s2 + $0x1f8] sm:$0xff]
    %v102 = vld [vmem:[%s2 + $0x200] sm:$0xf]
    %v103 = vld [vmem:[%s2 + $0x204] sm:$0xff]
    %v104 = vld [vmem:[%s2 + $0x20c] sm:$0xf]
    %v105 = vld [vmem:[%s2 + $0x210] sm:$0xff]
    %v106 = vld [vmem:[%s2 + $0x218] sm:$0xf]
    %v107 = vld [vmem:[%s2 + $0x21c] sm:$0xff]
    %v108 = vld [vmem:[%s2 + $0x224] sm:$0xf]
    %v109 = vld [vmem:[%s2 + $0x228] sm:$0xff]
    %v110 = vld [vmem:[%s2 + $0x230] sm:$0xf]
    %v111 = vld [vmem:[%s2 + $0x234] sm:$0xff]
    %v112 = vld [vmem:[%s2 + $0x23c] sm:$0xf]
    %v113 = vld [vmem:[%s2 + $0x240] sm:$0xff]
    %v114 = vld [vmem:[%s2 + $0x248] sm:$0xf]
    %v115 = vld [vmem:[%s2 + $0x24c] sm:$0xff]
    %v116 = vld [vmem:[%s2 + $0x254] sm:$0xf]
    %v117 = vld [vmem:[%s2 + $0x258] sm:$0xff]
    %v118 = vld [vmem:[%s2 + $0x260] sm:$0xf]
    %v119 = vld [vmem:[%s2 + $0x264] sm:$0xff]
    %v120 = vld [vmem:[%s2 + $0x26c] sm:$0xf]
    %v121 = vld [vmem:[%s2 + $0x270] sm:$0xff]
    %v122 = vld [vmem:[%s2 + $0x278] sm:$0xf]
    %v123 = vld [vmem:[%s2 + $0x27c] sm:$0xff]
    %v124 = vld [vmem:[%s2 + $0x284] sm:$0xf]
    %v125 = vld [vmem:[%s2 + $0x288] sm:$0xff]
    %v126 = vld [vmem:[%s2 + $0x290] sm:$0xf]
    %v127 = vld [vmem:[%s2 + $0x294] sm:$0xff]
    %v128 = vld [vmem:[%s2 + $0x29c] sm:$0xf]
    %v129 = vld [vmem:[%s2 + $0x2a0] sm:$0xff]
    %v130 = vld [vmem:[%s2 + $0x2a8] sm:$0xf]
    %v131 = vld [vmem:[%s2 + $0x2ac] sm:$0xff]
    %v132 = vld [vmem:[%s2 + $0x2b4] sm:$0xf]
    %v133 = vld [vmem:[%s2 + $0x2b8] sm:$0xff]
    %v134 = vld [vmem:[%s2 + $0x2c0] sm:$0xf]
    %v135 = vld [vmem:[%s2 + $0x2c4] sm:$0xff]
    %v136 = vld [vmem:[%s2 + $0x2cc] sm:$0xf]
    %v137 = vld [vmem:[%s2 + $0x2d0] sm:$0xff]
    %v138 = vld [vmem:[%s2 + $0x2d8] sm:$0xf]
    %v139 = vld [vmem:[%s2 + $0x2dc] sm:$0xff]
    %v140 = vld [vmem:[%s2 + $0x2e4] sm:$0xf]
    %v141 = vld [vmem:[%s2 + $0x2e8] sm:$0xff]
    %v142 = vld [vmem:[%s2 + $0x2f0] sm:$0xf]
    %v143 = vld [vmem:[%s2 + $0x2f4] sm:$0xff]
    %v144 = vld [vmem:[%s2 + $0x2fc] sm:$0xf]
    %v145 = vld [vmem:[%s1] sm:$0x7]
    %147 = vset.pattern.permute.xlu0 0
    %148 = vperm.xlu0 %147, %v145
    %v149 = vpop.permute.xlu0 %148
    %v152 = vcombine.high %v16, %v16
    %v154 = vunpack.c.l.s4 1983009808
    %v155 = vunpack.c.0.s8 %v154
    %v156 = vlaneseq
    %v157 = vshrl.u32 %v156, 7
    %v158 = vsub.s32 %v155, %v157
    %v159 = vrot.slane %v16, %v158
    %v161 = vunpack.c.l.s4 1983009808
    %v162 = vunpack.c.0.s8 %v161
    %v163 = vlaneseq
    %v164 = vshrl.u32 %v163, 7
    %v165 = vsub.s32 %v162, %v164
    %v166 = vrot.slane %v152, %v165
    %v167 = vcombine.high %v159, %v159
    %v298 = vunpack.c.l.b16 %v17
    %v299 = vunpack.c.h.b16 %v17
    %v300 = vunpack.c.l.b16 %v18
    %v301 = vunpack.c.l.b16 %v19
    %v302 = vunpack.c.h.b16 %v19
    %v303 = vunpack.c.l.b16 %v20
    %v304 = vunpack.c.l.b16 %v21
    %v305 = vunpack.c.h.b16 %v21
    %v306 = vunpack.c.l.b16 %v22
    %v307 = vunpack.c.l.b16 %v23
    %v308 = vunpack.c.h.b16 %v23
    %v309 = vunpack.c.l.b16 %v24
    %v310 = vunpack.c.l.b16 %v25
    %v311 = vunpack.c.h.b16 %v25
    %v312 = vunpack.c.l.b16 %v26
    %v313 = vunpack.c.l.b16 %v27
    %v314 = vunpack.c.h.b16 %v27
    %v315 = vunpack.c.l.b16 %v28
    %v316 = vunpack.c.l.b16 %v29
    %v317 = vunpack.c.h.b16 %v29
    %v318 = vunpack.c.l.b16 %v30
    %v319 = vunpack.c.l.b16 %v31
    %v320 = vunpack.c.h.b16 %v31
    %v321 = vunpack.c.l.b16 %v32
    %v322 = vunpack.c.l.b16 %v33
    %v323 = vunpack.c.h.b16 %v33
    %v324 = vunpack.c.l.b16 %v34
    %v325 = vunpack.c.l.b16 %v35
    %v326 = vunpack.c.h.b16 %v35
    %v327 = vunpack.c.l.b16 %v36
    %v328 = vunpack.c.l.b16 %v37
    %v329 = vunpack.c.h.b16 %v37
    %v330 = vunpack.c.l.b16 %v38
    %v331 = vunpack.c.l.b16 %v39
    %v332 = vunpack.c.h.b16 %v39
    %v333 = vunpack.c.l.b16 %v40
    %v334 = vunpack.c.l.b16 %v41
    %v335 = vunpack.c.h.b16 %v41
    %v336 = vunpack.c.l.b16 %v42
    %v337 = vunpack.c.l.b16 %v43
    %v338 = vunpack.c.h.b16 %v43
    %v339 = vunpack.c.l.b16 %v44
    %v340 = vunpack.c.l.b16 %v45
    %v341 = vunpack.c.h.b16 %v45
    %v342 = vunpack.c.l.b16 %v46
    %v343 = vunpack.c.l.b16 %v47
    %v344 = vunpack.c.h.b16 %v47
    %v345 = vunpack.c.l.b16 %v48
    %v346 = vunpack.c.l.b16 %v49
    %v347 = vunpack.c.h.b16 %v49
    %v348 = vunpack.c.l.b16 %v50
    %v349 = vunpack.c.l.b16 %v51
    %v350 = vunpack.c.h.b16 %v51
    %v351 = vunpack.c.l.b16 %v52
    %v352 = vunpack.c.l.b16 %v53
    %v353 = vunpack.c.h.b16 %v53
    %v354 = vunpack.c.l.b16 %v54
    %v355 = vunpack.c.l.b16 %v55
    %v356 = vunpack.c.h.b16 %v55
    %v357 = vunpack.c.l.b16 %v56
    %v358 = vunpack.c.l.b16 %v57
    %v359 = vunpack.c.h.b16 %v57
    %v360 = vunpack.c.l.b16 %v58
    %v361 = vunpack.c.l.b16 %v59
    %v362 = vunpack.c.h.b16 %v59
    %v363 = vunpack.c.l.b16 %v60
    %v364 = vunpack.c.l.b16 %v61
    %v365 = vunpack.c.h.b16 %v61
    %v366 = vunpack.c.l.b16 %v62
    %v367 = vunpack.c.l.b16 %v63
    %v368 = vunpack.c.h.b16 %v63
    %v369 = vunpack.c.l.b16 %v64
    %v370 = vunpack.c.l.b16 %v65
    %v371 = vunpack.c.h.b16 %v65
    %v372 = vunpack.c.l.b16 %v66
    %v373 = vunpack.c.l.b16 %v67
    %v374 = vunpack.c.h.b16 %v67
    %v375 = vunpack.c.l.b16 %v68
    %v376 = vunpack.c.l.b16 %v69
    %v377 = vunpack.c.h.b16 %v69
    %v378 = vunpack.c.l.b16 %v70
    %v379 = vunpack.c.l.b16 %v71
    %v380 = vunpack.c.h.b16 %v71
    %v381 = vunpack.c.l.b16 %v72
    %v382 = vunpack.c.l.b16 %v73
    %v383 = vunpack.c.h.b16 %v73
    %v384 = vunpack.c.l.b16 %v74
    %v385 = vunpack.c.l.b16 %v75
    %v386 = vunpack.c.h.b16 %v75
    %v387 = vunpack.c.l.b16 %v76
    %v388 = vunpack.c.l.b16 %v77
    %v389 = vunpack.c.h.b16 %v77
    %v390 = vunpack.c.l.b16 %v78
    %v391 = vunpack.c.l.b16 %v79
    %v392 = vunpack.c.h.b16 %v79
    %v393 = vunpack.c.l.b16 %v80
    %v394 = vunpack.c.l.b16 %v81
    %v395 = vunpack.c.h.b16 %v81
    %v396 = vunpack.c.l.b16 %v82
    %v397 = vunpack.c.l.b16 %v83
    %v398 = vunpack.c.h.b16 %v83
    %v399 = vunpack.c.l.b16 %v84
    %v400 = vunpack.c.l.b16 %v85
    %v401 = vunpack.c.h.b16 %v85
    %v402 = vunpack.c.l.b16 %v86
    %v403 = vunpack.c.l.b16 %v87
    %v404 = vunpack.c.h.b16 %v87
    %v405 = vunpack.c.l.b16 %v88
    %v406 = vunpack.c.l.b16 %v89
    %v407 = vunpack.c.h.b16 %v89
    %v408 = vunpack.c.l.b16 %v90
    %v409 = vunpack.c.l.b16 %v91
    %v410 = vunpack.c.h.b16 %v91
    %v411 = vunpack.c.l.b16 %v92
    %v412 = vunpack.c.l.b16 %v93
    %v413 = vunpack.c.h.b16 %v93
    %v414 = vunpack.c.l.b16 %v94
    %v415 = vunpack.c.l.b16 %v95
    %v416 = vunpack.c.h.b16 %v95
    %v417 = vunpack.c.l.b16 %v96
    %v418 = vunpack.c.l.b16 %v97
    %v419 = vunpack.c.h.b16 %v97
    %v420 = vunpack.c.l.b16 %v98
    %v421 = vunpack.c.l.b16 %v99
    %v422 = vunpack.c.h.b16 %v99
    %v423 = vunpack.c.l.b16 %v100
    %v424 = vunpack.c.l.b16 %v101
    %v425 = vunpack.c.h.b16 %v101
    %v426 = vunpack.c.l.b16 %v102
    %v427 = vunpack.c.l.b16 %v103
    %v428 = vunpack.c.h.b16 %v103
    %v429 = vunpack.c.l.b16 %v104
    %v430 = vunpack.c.l.b16 %v105
    %v431 = vunpack.c.h.b16 %v105
    %v432 = vunpack.c.l.b16 %v106
    %v433 = vunpack.c.l.b16 %v107
    %v434 = vunpack.c.h.b16 %v107
    %v435 = vunpack.c.l.b16 %v108
    %v436 = vunpack.c.l.b16 %v109
    %v437 = vunpack.c.h.b16 %v109
    %v438 = vunpack.c.l.b16 %v110
    %v439 = vunpack.c.l.b16 %v111
    %v440 = vunpack.c.h.b16 %v111
    %v441 = vunpack.c.l.b16 %v112
    %v442 = vunpack.c.l.b16 %v113
    %v443 = vunpack.c.h.b16 %v113
    %v444 = vunpack.c.l.b16 %v114
    %v445 = vunpack.c.l.b16 %v115
    %v446 = vunpack.c.h.b16 %v115
    %v447 = vunpack.c.l.b16 %v116
    %v448 = vunpack.c.l.b16 %v117
    %v449 = vunpack.c.h.b16 %v117
    %v450 = vunpack.c.l.b16 %v118
    %v451 = vunpack.c.l.b16 %v119
    %v452 = vunpack.c.h.b16 %v119
    %v453 = vunpack.c.l.b16 %v120
    %v454 = vunpack.c.l.b16 %v121
    %v455 = vunpack.c.h.b16 %v121
    %v456 = vunpack.c.l.b16 %v122
    %v457 = vunpack.c.l.b16 %v123
    %v458 = vunpack.c.h.b16 %v123
    %v459 = vunpack.c.l.b16 %v124
    %v460 = vunpack.c.l.b16 %v125
    %v461 = vunpack.c.h.b16 %v125
    %v462 = vunpack.c.l.b16 %v126
    %v463 = vunpack.c.l.b16 %v127
    %v464 = vunpack.c.h.b16 %v127
    %v465 = vunpack.c.l.b16 %v128
    %v466 = vunpack.c.l.b16 %v129
    %v467 = vunpack.c.h.b16 %v129
    %v468 = vunpack.c.l.b16 %v130
    %v469 = vunpack.c.l.b16 %v131
    %v470 = vunpack.c.h.b16 %v131
    %v471 = vunpack.c.l.b16 %v132
    %v472 = vunpack.c.l.b16 %v133
    %v473 = vunpack.c.h.b16 %v133
    %v474 = vunpack.c.l.b16 %v134
    %v475 = vunpack.c.l.b16 %v135
    %v476 = vunpack.c.h.b16 %v135
    %v477 = vunpack.c.l.b16 %v136
    %v478 = vunpack.c.l.b16 %v137
    %v479 = vunpack.c.h.b16 %v137
    %v480 = vunpack.c.l.b16 %v138
    %v481 = vunpack.c.l.b16 %v139
    %v482 = vunpack.c.h.b16 %v139
    %v483 = vunpack.c.l.b16 %v140
    %v484 = vunpack.c.l.b16 %v141
    %v485 = vunpack.c.h.b16 %v141
    %v486 = vunpack.c.l.b16 %v142
    %v487 = vunpack.c.l.b16 %v143
    %v488 = vunpack.c.h.b16 %v143
    %v489 = vunpack.c.l.b16 %v144
    %v490 = vpack.c.b16 %v301, %v298
    %v491 = vpack.c.b16 %v302, %v299
    %v492 = vpack.c.b16 %v303, %v300
    %v493 = vpack.c.b16 %v307, %v304
    %v494 = vpack.c.b16 %v308, %v305
    %v495 = vpack.c.b16 %v309, %v306
    %v496 = vpack.c.b16 %v313, %v310
    %v497 = vpack.c.b16 %v314, %v311
    %v498 = vpack.c.b16 %v315, %v312
    %v499 = vpack.c.b16 %v319, %v316
    %v500 = vpack.c.b16 %v320, %v317
    %v501 = vpack.c.b16 %v321, %v318
    %v502 = vpack.c.b16 %v325, %v322
    %v503 = vpack.c.b16 %v326, %v323
    %v504 = vpack.c.b16 %v327, %v324
    %v505 = vpack.c.b16 %v331, %v328
    %v506 = vpack.c.b16 %v332, %v329
    %v507 = vpack.c.b16 %v333, %v330
    %v508 = vpack.c.b16 %v337, %v334
    %v509 = vpack.c.b16 %v338, %v335
    %v510 = vpack.c.b16 %v339, %v336
    %v511 = vpack.c.b16 %v343, %v340
    %v512 = vpack.c.b16 %v344, %v341
    %v513 = vpack.c.b16 %v345, %v342
    %v514 = vpack.c.b16 %v349, %v346
    %v515 = vpack.c.b16 %v350, %v347
    %v516 = vpack.c.b16 %v351, %v348
    %v517 = vpack.c.b16 %v355, %v352
    %v518 = vpack.c.b16 %v356, %v353
    %v519 = vpack.c.b16 %v357, %v354
    %v520 = vpack.c.b16 %v361, %v358
    %v521 = vpack.c.b16 %v362, %v359
    %v522 = vpack.c.b16 %v363, %v360
    %v523 = vpack.c.b16 %v367, %v364
    %v524 = vpack.c.b16 %v368, %v365
    %v525 = vpack.c.b16 %v369, %v366
    %v526 = vpack.c.b16 %v373, %v370
    %v527 = vpack.c.b16 %v374, %v371
    %v528 = vpack.c.b16 %v375, %v372
    %v529 = vpack.c.b16 %v379, %v376
    %v530 = vpack.c.b16 %v380, %v377
    %v531 = vpack.c.b16 %v381, %v378
    %v532 = vpack.c.b16 %v385, %v382
    %v533 = vpack.c.b16 %v386, %v383
    %v534 = vpack.c.b16 %v387, %v384
    %v535 = vpack.c.b16 %v391, %v388
    %v536 = vpack.c.b16 %v392, %v389
    %v537 = vpack.c.b16 %v393, %v390
    %v538 = vpack.c.b16 %v397, %v394
    %v539 = vpack.c.b16 %v398, %v395
    %v540 = vpack.c.b16 %v399, %v396
    %v541 = vpack.c.b16 %v403, %v400
    %v542 = vpack.c.b16 %v404, %v401
    %v543 = vpack.c.b16 %v405, %v402
    %v544 = vpack.c.b16 %v409, %v406
    %v545 = vpack.c.b16 %v410, %v407
    %v546 = vpack.c.b16 %v411, %v408
    %v547 = vpack.c.b16 %v415, %v412
    %v548 = vpack.c.b16 %v416, %v413
    %v549 = vpack.c.b16 %v417, %v414
    %v550 = vpack.c.b16 %v421, %v418
    %v551 = vpack.c.b16 %v422, %v419
    %v552 = vpack.c.b16 %v423, %v420
    %v553 = vpack.c.b16 %v427, %v424
    %v554 = vpack.c.b16 %v428, %v425
    %v555 = vpack.c.b16 %v429, %v426
    %v556 = vpack.c.b16 %v433, %v430
    %v557 = vpack.c.b16 %v434, %v431
    %v558 = vpack.c.b16 %v435, %v432
    %v559 = vpack.c.b16 %v439, %v436
    %v560 = vpack.c.b16 %v440, %v437
    %v561 = vpack.c.b16 %v441, %v438
    %v562 = vpack.c.b16 %v445, %v442
    %v563 = vpack.c.b16 %v446, %v443
    %v564 = vpack.c.b16 %v447, %v444
    %v565 = vpack.c.b16 %v451, %v448
    %v566 = vpack.c.b16 %v452, %v449
    %v567 = vpack.c.b16 %v453, %v450
    %v568 = vpack.c.b16 %v457, %v454
    %v569 = vpack.c.b16 %v458, %v455
    %v570 = vpack.c.b16 %v459, %v456
    %v571 = vpack.c.b16 %v463, %v460
    %v572 = vpack.c.b16 %v464, %v461
    %v573 = vpack.c.b16 %v465, %v462
    %v574 = vpack.c.b16 %v469, %v466
    %v575 = vpack.c.b16 %v470, %v467
    %v576 = vpack.c.b16 %v471, %v468
    %v577 = vpack.c.b16 %v475, %v472
    %v578 = vpack.c.b16 %v476, %v473
    %v579 = vpack.c.b16 %v477, %v474
    %v580 = vpack.c.b16 %v481, %v478
    %v581 = vpack.c.b16 %v482, %v479
    %v582 = vpack.c.b16 %v483, %v480
    %v583 = vpack.c.b16 %v487, %v484
    %v584 = vpack.c.b16 %v488, %v485
    %v585 = vpack.c.b16 %v489, %v486
    %vm650 = vcmask 261120
    %v652 = vsel %vm650, %v166, 0
    %v655 = vsel %vm650, %v492, 0
    %v658 = vsel %vm650, %v495, 0
    %v661 = vsel %vm650, %v498, 0
    %v664 = vsel %vm650, %v501, 0
    %v667 = vsel %vm650, %v504, 0
    %v670 = vsel %vm650, %v507, 0
    %v673 = vsel %vm650, %v510, 0
    %v676 = vsel %vm650, %v513, 0
    %v679 = vsel %vm650, %v516, 0
    %v682 = vsel %vm650, %v519, 0
    %v685 = vsel %vm650, %v522, 0
    %v688 = vsel %vm650, %v525, 0
    %v691 = vsel %vm650, %v528, 0
    %v694 = vsel %vm650, %v531, 0
    %v697 = vsel %vm650, %v534, 0
    %v700 = vsel %vm650, %v537, 0
    %v703 = vsel %vm650, %v540, 0
    %v706 = vsel %vm650, %v543, 0
    %v709 = vsel %vm650, %v546, 0
    %v712 = vsel %vm650, %v549, 0
    %v715 = vsel %vm650, %v552, 0
    %v718 = vsel %vm650, %v555, 0
    %v721 = vsel %vm650, %v558, 0
    %v724 = vsel %vm650, %v561, 0
    %v727 = vsel %vm650, %v564, 0
    %v730 = vsel %vm650, %v567, 0
    %v733 = vsel %vm650, %v570, 0
    %v736 = vsel %vm650, %v573, 0
    %v739 = vsel %vm650, %v576, 0
    %v742 = vsel %vm650, %v579, 0
    %v745 = vsel %vm650, %v582, 0
    %v748 = vsel %vm650, %v585, 0
    %750 = vmatprep.subr.bf16.mxu0 %v491
    %751 = vmatpush1.bf16.xpose.msra.mxu0 %v490
    %752 = vmatprep.subr.bf16.mxu0 %v494
    %753 = vmatpush1.bf16.xpose.msra.mxu0 %v493
    %754 = vmatprep.subr.bf16.mxu0 %v497
    %755 = vmatpush1.bf16.xpose.msra.mxu0 %v496
    %756 = vmatprep.subr.bf16.mxu0 %v500
    %757 = vmatpush1.bf16.xpose.msra.mxu0 %v499
    %758 = vmatprep.subr.bf16.mxu0 %v503
    %759 = vmatpush1.bf16.xpose.msra.mxu0 %v502
    %760 = vmatprep.subr.bf16.mxu0 %v506
    %761 = vmatpush1.bf16.xpose.msra.mxu0 %v505
    %762 = vmatprep.subr.bf16.mxu0 %v509
    %763 = vmatpush1.bf16.xpose.msra.mxu0 %v508
    %764 = vmatprep.subr.bf16.mxu0 %v512
    %765 = vmatpush1.bf16.xpose.msra.mxu0 %v511
    %766 = vmatprep.subr.bf16.mxu0 %v515
    %767 = vmatpush1.bf16.xpose.msra.mxu0 %v514
    %768 = vmatprep.subr.bf16.mxu0 %v518
    %769 = vmatpush1.bf16.xpose.msra.mxu0 %v517
    %770 = vmatprep.subr.bf16.mxu0 %v521
    %771 = vmatpush1.bf16.xpose.msra.mxu0 %v520
    %772 = vmatprep.subr.bf16.mxu0 %v524
    %773 = vmatpush1.bf16.xpose.msra.mxu0 %v523
    %774 = vmatprep.subr.bf16.mxu0 %v527
    %775 = vmatpush1.bf16.xpose.msra.mxu0 %v526
    %776 = vmatprep.subr.bf16.mxu0 %v530
    %777 = vmatpush1.bf16.xpose.msra.mxu0 %v529
    %778 = vmatprep.subr.bf16.mxu0 %v533
    %779 = vmatpush1.bf16.xpose.msra.mxu0 %v532
    %780 = vmatprep.subr.bf16.mxu0 %v536
    %781 = vmatpush1.bf16.xpose.msra.mxu0 %v535
    %782 = vmatprep.mubr.bf16.mxu0 %v167
    %783 = vmatmul.mubr.bf16.gmra.mrb[0].mxu0 %v159
    %v784 = vpop.f32.mrb[0].mxu0
    %v785 = vadd.f32 %v149, %v784
    %v786 = vpop.f32.mrb[0].mxu0
    %v787 = vadd.f32 %v149, %v786
    %v788 = vpop.f32.mrb[0].mxu0
    %v789 = vpop.f32.mrb[0].mxu0
    %790 = vdwg.mxu0
    %791 = vmatprep.subr.bf16.mxu0 0
    %792 = vmatpush1.bf16.xpose.msra.mxu0 %v655
    %793 = vmatprep.subr.bf16.mxu0 0
    %794 = vmatpush1.bf16.xpose.msra.mxu0 %v658
    %795 = vmatprep.subr.bf16.mxu0 0
    %796 = vmatpush1.bf16.xpose.msra.mxu0 %v661
    %797 = vmatprep.subr.bf16.mxu0 0
    %798 = vmatpush1.bf16.xpose.msra.mxu0 %v664
    %799 = vmatprep.subr.bf16.mxu0 0
    %800 = vmatpush1.bf16.xpose.msra.mxu0 %v667
    %801 = vmatprep.subr.bf16.mxu0 0
    %802 = vmatpush1.bf16.xpose.msra.mxu0 %v670
    %803 = vmatprep.subr.bf16.mxu0 0
    %804 = vmatpush1.bf16.xpose.msra.mxu0 %v673
    %805 = vmatprep.subr.bf16.mxu0 0
    %806 = vmatpush1.bf16.xpose.msra.mxu0 %v676
    %807 = vmatprep.subr.bf16.mxu0 0
    %808 = vmatpush1.bf16.xpose.msra.mxu0 %v679
    %809 = vmatprep.subr.bf16.mxu0 0
    %810 = vmatpush1.bf16.xpose.msra.mxu0 %v682
    %811 = vmatprep.subr.bf16.mxu0 0
    %812 = vmatpush1.bf16.xpose.msra.mxu0 %v685
    %813 = vmatprep.subr.bf16.mxu0 0
    %814 = vmatpush1.bf16.xpose.msra.mxu0 %v688
    %815 = vmatprep.subr.bf16.mxu0 0
    %816 = vmatpush1.bf16.xpose.msra.mxu0 %v691
    %817 = vmatprep.subr.bf16.mxu0 0
    %818 = vmatpush1.bf16.xpose.msra.mxu0 %v694
    %819 = vmatprep.subr.bf16.mxu0 0
    %820 = vmatpush1.bf16.xpose.msra.mxu0 %v697
    %821 = vmatprep.subr.bf16.mxu0 0
    %822 = vmatpush1.bf16.xpose.msra.mxu0 %v700
    %823 = vmatprep.mubr.bf16.mxu0 0
    %824 = vmatmul.mubr.bf16.gmra.mrb[0].mxu0 %v652
    %v825 = vpop.f32.mrb[0].mxu0
    %v826 = vadd.f32 %v785, %v825
    %v827 = vpop.f32.mrb[0].mxu0
    %v828 = vadd.f32 %v787, %v827
    %v829 = vpop.f32.mrb[0].mxu0
    %v830 = vpop.f32.mrb[0].mxu0
    %831 = vdwg.mxu0
    %832 = vmatprep.subr.bf16.mxu0 %v539
    %833 = vmatpush1.bf16.xpose.msra.mxu0 %v538
    %834 = vmatprep.subr.bf16.mxu0 %v542
    %835 = vmatpush1.bf16.xpose.msra.mxu0 %v541
    %836 = vmatprep.subr.bf16.mxu0 %v545
    %837 = vmatpush1.bf16.xpose.msra.mxu0 %v544
    %838 = vmatprep.subr.bf16.mxu0 %v548
    %839 = vmatpush1.bf16.xpose.msra.mxu0 %v547
    %840 = vmatprep.subr.bf16.mxu0 %v551
    %841 = vmatpush1.bf16.xpose.msra.mxu0 %v550
    %842 = vmatprep.subr.bf16.mxu0 %v554
    %843 = vmatpush1.bf16.xpose.msra.mxu0 %v553
    %844 = vmatprep.subr.bf16.mxu0 %v557
    %845 = vmatpush1.bf16.xpose.msra.mxu0 %v556
    %846 = vmatprep.subr.bf16.mxu0 %v560
    %847 = vmatpush1.bf16.xpose.msra.mxu0 %v559
    %848 = vmatprep.subr.bf16.mxu0 %v563
    %849 = vmatpush1.bf16.xpose.msra.mxu0 %v562
    %850 = vmatprep.subr.bf16.mxu0 %v566
    %851 = vmatpush1.bf16.xpose.msra.mxu0 %v565
    %852 = vmatprep.subr.bf16.mxu0 %v569
    %853 = vmatpush1.bf16.xpose.msra.mxu0 %v568
    %854 = vmatprep.subr.bf16.mxu0 %v572
    %855 = vmatpush1.bf16.xpose.msra.mxu0 %v571
    %856 = vmatprep.subr.bf16.mxu0 %v575
    %857 = vmatpush1.bf16.xpose.msra.mxu0 %v574
    %858 = vmatprep.subr.bf16.mxu0 %v578
    %859 = vmatpush1.bf16.xpose.msra.mxu0 %v577
    %860 = vmatprep.subr.bf16.mxu0 %v581
    %861 = vmatpush1.bf16.xpose.msra.mxu0 %v580
    %862 = vmatprep.subr.bf16.mxu0 %v584
    %863 = vmatpush1.bf16.xpose.msra.mxu0 %v583
    %864 = vmatprep.mubr.bf16.mxu0 %v167
    %865 = vmatmul.mubr.bf16.gmra.mrb[0].mxu0 %v159
    %v866 = vpop.f32.mrb[0].mxu0
    %v867 = vadd.f32 %v149, %v866
    %v868 = vpop.f32.mrb[0].mxu0
    %v869 = vadd.f32 %v149, %v868
    %v870 = vpop.f32.mrb[0].mxu0
    %v871 = vpop.f32.mrb[0].mxu0
    %872 = vdwg.mxu0
    %873 = vmatprep.subr.bf16.mxu0 0
    %874 = vmatpush1.bf16.xpose.msra.mxu0 %v703
    %875 = vmatprep.subr.bf16.mxu0 0
    %876 = vmatpush1.bf16.xpose.msra.mxu0 %v706
    %877 = vmatprep.subr.bf16.mxu0 0
    %878 = vmatpush1.bf16.xpose.msra.mxu0 %v709
    %879 = vmatprep.subr.bf16.mxu0 0
    %880 = vmatpush1.bf16.xpose.msra.mxu0 %v712
    %881 = vmatprep.subr.bf16.mxu0 0
    %882 = vmatpush1.bf16.xpose.msra.mxu0 %v715
    %883 = vmatprep.subr.bf16.mxu0 0
    %884 = vmatpush1.bf16.xpose.msra.mxu0 %v718
    %885 = vmatprep.subr.bf16.mxu0 0
    %886 = vmatpush1.bf16.xpose.msra.mxu0 %v721
    %887 = vmatprep.subr.bf16.mxu0 0
    %888 = vmatpush1.bf16.xpose.msra.mxu0 %v724
    %889 = vmatprep.subr.bf16.mxu0 0
    %890 = vmatpush1.bf16.xpose.msra.mxu0 %v727
    %891 = vmatprep.subr.bf16.mxu0 0
    %892 = vmatpush1.bf16.xpose.msra.mxu0 %v730
    %893 = vmatprep.subr.bf16.mxu0 0
    %894 = vmatpush1.bf16.xpose.msra.mxu0 %v733
    %895 = vmatprep.subr.bf16.mxu0 0
    %896 = vmatpush1.bf16.xpose.msra.mxu0 %v736
    %897 = vmatprep.subr.bf16.mxu0 0
    %898 = vmatpush1.bf16.xpose.msra.mxu0 %v739
    %899 = vmatprep.subr.bf16.mxu0 0
    %900 = vmatpush1.bf16.xpose.msra.mxu0 %v742
    %901 = vmatprep.subr.bf16.mxu0 0
    %902 = vmatpush1.bf16.xpose.msra.mxu0 %v745
    %903 = vmatprep.subr.bf16.mxu0 0
    %904 = vmatpush1.bf16.xpose.msra.mxu0 %v748
    %905 = vmatprep.mubr.bf16.mxu0 0
    %906 = vmatmul.mubr.bf16.gmra.mrb[0].mxu0 %v652
    %v907 = vpop.f32.mrb[0].mxu0
    %v908 = vadd.f32 %v867, %v907
    %v909 = vpop.f32.mrb[0].mxu0
    %v910 = vadd.f32 %v869, %v909
    %v911 = vpop.f32.mrb[0].mxu0
    %v912 = vpop.f32.mrb[0].mxu0
    %913 = vdwg.mxu0
    %v918 = vcombine.low %v826, %v828
    %v919 = vcombine.low %v908, %v910
    %922 = vst [vmem:[#allocation2] sm:$0x77] %v918
    %923 = vst [vmem:[#allocation2 + $0x8] sm:$0x77] %v919
    // Predicated region
    $region14: #{tpu_custom_call.1} parent=1 // pred_check
      _
    $region15: #{tpu_custom_call.1} parent=1 // pred_check_branch
      %925 = sbr.rel (0) target = $region17
    $region16: #{tpu_custom_call.1} parent=1 // pred_region
      %s927 = ssub.s32 256, 256
      %928 = vsyncadd [#allocation3], %s927
      %s930 = sshll.u32 [#allocation2], 4
      %s931 = int_to_ptr.vmem [resolvable:$true] %s930
      %933 = dma.vmem_to_hbm [thread:$0]  %s931, 256, %s3, [#allocation3]
    $region17: #{tpu_custom_call.1} parent=1 // pred_fallthru
      _
    // Predicated region
    $region18: #{tpu_custom_call.1} parent=1 // pred_check
      _
    $region19: #{tpu_custom_call.1} parent=1 // pred_check_branch
      %935 = sbr.rel (0) target = $region21
    $region20: #{tpu_custom_call.1} parent=1 // pred_region
      %936 = dma.done [#allocation3], 256
    $region21: #{tpu_custom_call.1} parent=1 // pred_fallthru
      _
    %937 = vsyncpa [#allocation3], 1

</llo_original>
